<compile_context>
chip_gen: v7x
topology: tpu7x:2x2x1
jax: 0.10.0
libtpu: 0.0.40
codegen_flags: <defaults>
</compile_context>

<pallas_src>
import jax
import jax.numpy as jnp
from jax.experimental import pallas as pl
from jax.experimental.pallas import tpu as pltpu


def _boundary_kernel(labels_ref, x_ref, centd_ref, loss_ref, delta_ref):
    B = x_ref.shape[0]
    L, d_plus = centd_ref.shape
    D = d_plus - 1

    centd = centd_ref[...].astype(jnp.float32)                         # (L, D+1)

    # softplus of the raw-delta column -> returned delta (L, 1), numerically stable
    raw_col = centd[:, D:d_plus]                                       # (L, 1)
    delta_ref[...] = (jnp.maximum(raw_col, 0.0)
                      + jnp.log(1.0 + jnp.exp(-jnp.abs(raw_col))))

    # one-hot built in-kernel, then a single MXU dot gathers [centroid | raw delta] rows
    labels = labels_ref[...]                                           # (B, 1) int32
    oh = (jax.lax.broadcasted_iota(jnp.int32, (B, L), 1) == labels).astype(jnp.float32)
    gathered = jnp.dot(oh, centd, preferred_element_type=jnp.float32)  # (B, D+1)
    c = gathered[:, :D]                                                # (B, D)  = centroids[labels]
    d_raw = gathered[:, D:d_plus]                                      # (B, 1)  = raw_delta[labels]
    d = jnp.maximum(d_raw, 0.0) + jnp.log(1.0 + jnp.exp(-jnp.abs(d_raw)))  # softplus after gather

    diff = x_ref[...].astype(jnp.float32) - c
    euc = jnp.sqrt(jnp.sum(diff * diff, axis=1, keepdims=True))        # (B, 1)

    # (euc-d)*[euc>d] + (d-euc)*[euc<d] == |euc - d| per sample; both means are over B.
    loss_ref[...] = jnp.sum(jnp.abs(euc - d), axis=0, keepdims=True) / B


def boundary_loss(pooled_output, centroids, labels, delta_param):
    """Forward of BoundaryLoss. Returns (loss: f32 scalar, delta = softplus(delta_param): (L,))."""
    B, D = pooled_output.shape
    L = centroids.shape[0]

    # Fuse the delta gather into the centroid matmul: one (L, D+1) operand.  The MXU output
    # N-dim is padded to 128 lanes anyway, so the extra column is free.
    cdtype = jnp.promote_types(centroids.dtype, delta_param.dtype)
    centd = jnp.concatenate(
        [centroids.astype(cdtype), delta_param.reshape(L, 1).astype(cdtype)], axis=1)  # (L, D+1)
    labels_2d = labels.astype(jnp.int32).reshape(B, 1)

    loss, delta_sp = pl.pallas_call(
        _boundary_kernel,
        out_shape=(
            jax.ShapeDtypeStruct((1, 1), jnp.float32),   # loss (scalar, lane-dense VMEM block)
            jax.ShapeDtypeStruct((L, 1), jnp.float32),   # softplus(delta)
        ),
        in_specs=[
            pl.BlockSpec(memory_space=pltpu.MemorySpace.VMEM),  # labels (B, 1) int32
            pl.BlockSpec(memory_space=pltpu.MemorySpace.VMEM),  # x (B, D), original dtype
            pl.BlockSpec(memory_space=pltpu.MemorySpace.VMEM),  # [centroids | raw delta] (L, D+1)
        ],
        out_specs=(
            pl.BlockSpec(memory_space=pltpu.MemorySpace.VMEM),
            pl.BlockSpec(memory_space=pltpu.MemorySpace.VMEM),
        ),
    )(labels_2d, pooled_output, centd)

    return loss[0, 0], delta_sp.reshape(L)


if __name__ == "__main__":
    key = jax.random.PRNGKey(0)
    k1, k2, k3, k4 = jax.random.split(key, 4)

    num_labels, feat_dim, batch = 10, 32, 8
    pooled = jax.random.normal(k1, (batch, feat_dim), jnp.float32)
    centroids = jax.random.normal(k2, (num_labels, feat_dim), jnp.float32)
    labels = jax.random.randint(k3, (batch,), 0, num_labels, jnp.int32)
    # nn.Parameter(t.randn(num_labels)) + nn.init.normal_  -> deterministic normal here
    delta_param = jax.random.normal(k4, (num_labels,), jnp.float32)

    loss, delta = boundary_loss(pooled, centroids, labels, delta_param)
    jax.block_until_ready((loss, delta))

    # sanity check vs. pure-JAX reference of the torch math (original masked two-branch form)
    dsp_ref = jax.nn.softplus(delta_param)
    c_ref = centroids[labels]
    d_ref = dsp_ref[labels]
    euc_ref = jnp.linalg.norm(pooled - c_ref, axis=1)
    pos = (euc_ref - d_ref) * (euc_ref > d_ref)
    neg = (d_ref - euc_ref) * (euc_ref < d_ref)
    loss_ref_val = pos.mean() + neg.mean()
    assert jnp.allclose(loss, loss_ref_val, atol=1e-5), (loss, loss_ref_val)
    assert jnp.allclose(delta, dsp_ref, atol=1e-5)

    print("KERNEL_OK")
</pallas_src>

<mosaic_0001>
module attributes {stable_mosaic.version = 11 : i64} {
  func.func @_boundary_kernel(%arg0: memref<8x1xi32, #tpu.memory_space<vmem>>, %arg1: memref<8x32xf32, #tpu.memory_space<vmem>>, %arg2: memref<10x33xf32, #tpu.memory_space<vmem>>, %arg3: memref<1x1xf32, #tpu.memory_space<vmem>>, %arg4: memref<10x1xf32, #tpu.memory_space<vmem>>) attributes {dimension_semantics = [], scalar_prefetch = 0 : i64, scratch_operands = 0 : i64, tpu.core_type = #tpu.core_type<tc>} {
    %c0 = arith.constant 0 : index
    %c0_0 = arith.constant 0 : index
    %0 = vector.load %arg2[%c0, %c0_0] : memref<10x33xf32, #tpu.memory_space<vmem>>, vector<10x33xf32>
    %1 = vector.extract_strided_slice %0 {offsets = [0, 32], sizes = [10, 1], strides = [1, 1]} : vector<10x33xf32> to vector<10x1xf32>
    %cst = arith.constant 0.000000e+00 : f32
    %2 = vector.broadcast %cst : f32 to vector<10x1xf32>
    %3 = arith.maximumf %1, %2 : vector<10x1xf32>
    %4 = math.absf %1 : vector<10x1xf32>
    %cst_1 = arith.constant 0.000000e+00 : f32
    %5 = vector.broadcast %cst_1 : f32 to vector<10x1xf32>
    %6 = arith.subf %5, %4 : vector<10x1xf32>
    %7 = math.exp %6 : vector<10x1xf32>
    %cst_2 = arith.constant 1.000000e+00 : f32
    %8 = vector.broadcast %cst_2 : f32 to vector<10x1xf32>
    %9 = arith.addf %8, %7 : vector<10x1xf32>
    %10 = math.log %9 : vector<10x1xf32>
    %11 = arith.addf %3, %10 : vector<10x1xf32>
    %c0_3 = arith.constant 0 : index
    %c0_4 = arith.constant 0 : index
    %12 = vector.load %arg4[%c0_3, %c0_4] : memref<10x1xf32, #tpu.memory_space<vmem>>, vector<10x1xf32>
    tpu.vector_store %arg4[%c0_3, %c0_4], %11 {strides = array<i32>} : memref<10x1xf32, #tpu.memory_space<vmem>>, vector<10x1xf32>,
    %c0_5 = arith.constant 0 : index
    %c0_6 = arith.constant 0 : index
    %13 = vector.load %arg0[%c0_5, %c0_6] : memref<8x1xi32, #tpu.memory_space<vmem>>, vector<8x1xi32>
    %14 = tpu.iota {dimensions = array<i32: 1>} : vector<8x10xi32>
    %15 = vector.broadcast %13 : vector<8x1xi32> to vector<8x10xi32>
    %16 = arith.cmpi eq, %14, %15 : vector<8x10xi32>
    %17 = arith.extui %16 : vector<8x10xi1> to vector<8x10xi32>
    %18 = arith.sitofp %17 : vector<8x10xi32> to vector<8x10xf32>
    %cst_7 = arith.constant dense<0.000000e+00> : vector<8x33xf32>
    %19 = tpu.matmul %18, %0, %cst_7 {dimension_numbers = #tpu.dot_dimension_numbers<[1], [0], [0], [1], [0, 0, 1, 1], [], []>} : vector<8x10xf32>, vector<10x33xf32>, vector<8x33xf32> -> vector<8x33xf32>
    %20 = vector.extract_strided_slice %19 {offsets = [0, 0], sizes = [8, 32], strides = [1, 1]} : vector<8x33xf32> to vector<8x32xf32>
    %21 = vector.extract_strided_slice %19 {offsets = [0, 32], sizes = [8, 1], strides = [1, 1]} : vector<8x33xf32> to vector<8x1xf32>
    %cst_8 = arith.constant 0.000000e+00 : f32
    %22 = vector.broadcast %cst_8 : f32 to vector<8x1xf32>
    %23 = arith.maximumf %21, %22 : vector<8x1xf32>
    %24 = math.absf %21 : vector<8x1xf32>
    %cst_9 = arith.constant 0.000000e+00 : f32
    %25 = vector.broadcast %cst_9 : f32 to vector<8x1xf32>
    %26 = arith.subf %25, %24 : vector<8x1xf32>
    %27 = math.exp %26 : vector<8x1xf32>
    %cst_10 = arith.constant 1.000000e+00 : f32
    %28 = vector.broadcast %cst_10 : f32 to vector<8x1xf32>
    %29 = arith.addf %28, %27 : vector<8x1xf32>
    %30 = math.log %29 : vector<8x1xf32>
    %31 = arith.addf %23, %30 : vector<8x1xf32>
    %c0_11 = arith.constant 0 : index
    %c0_12 = arith.constant 0 : index
    %32 = vector.load %arg1[%c0_11, %c0_12] : memref<8x32xf32, #tpu.memory_space<vmem>>, vector<8x32xf32>
    %33 = arith.subf %32, %20 : vector<8x32xf32>
    %34 = arith.mulf %33, %33 : vector<8x32xf32>
    %cst_13 = arith.constant dense<0.000000e+00> : vector<8xf32>
    %35 = vector.multi_reduction <add>, %34, %cst_13 [1] : vector<8x32xf32> to vector<8xf32>
    %36 = vector.shape_cast %35 : vector<8xf32> to vector<8x1xf32>
    %37 = math.sqrt %36 : vector<8x1xf32>
    %38 = arith.subf %37, %31 : vector<8x1xf32>
    %39 = math.absf %38 : vector<8x1xf32>
    %cst_14 = arith.constant dense<0.000000e+00> : vector<1xf32>
    %40 = vector.multi_reduction <add>, %39, %cst_14 [0] : vector<8x1xf32> to vector<1xf32>
    %41 = vector.shape_cast %40 : vector<1xf32> to vector<1x1xf32>
    %cst_15 = arith.constant 8.000000e+00 : f32
    %42 = vector.broadcast %cst_15 : f32 to vector<1x1xf32>
    %43 = arith.divf %41, %42 : vector<1x1xf32>
    %c0_16 = arith.constant 0 : index
    %c0_17 = arith.constant 0 : index
    %44 = vector.load %arg3[%c0_16, %c0_17] : memref<1x1xf32, #tpu.memory_space<vmem>>, vector<1x1xf32>
    tpu.vector_store %arg3[%c0_16, %c0_17], %43 {strides = array<i32>} : memref<1x1xf32, #tpu.memory_space<vmem>>, vector<1x1xf32>,
    return
  }
}

</mosaic_0001>

<llo_original>
// kernel: tpu_custom_call.1
$region0: #{tpu_custom_call.1}
  #allocation0 [shape = 'u32[]', space=smem, size = 0x4, offset = 0x4, fixed_abs, tag = 'smem constant byte address 0x4 - core index']
  #allocation1 [shape = 'u32[144,128]{1,0:T(1,128)}', space=vmem, size = 0x12000, scoped, tag = 'internal scratch']
  %s0 = inlined_call_operand.vmem [shape: s32[8,1], index: 0, kind: input, shape index: {}]
  %s1 = inlined_call_operand.hbm [shape: f32[8,32], index: 1, kind: input, shape index: {}]
  %s2 = inlined_call_operand.vmem [shape: f32[10,33], index: 2, kind: input, shape index: {}]
  %s3 = inlined_call_operand.hbm [shape: f32[1,1], index: 3, kind: output, shape index: {0}]
  %s4 = inlined_call_operand.vmem [shape: f32[10,1], index: 4, kind: output, shape index: {1}]
  %5 = xla_tuple %s3, %s4
  %s6 = sld [smem:[#allocation0]]
  $region34: #{tpu_custom_call.1} parent=0
    _
  %s8 = ssub.s32 1, %s6
  %s9 = scalar_select 0, %s8, %s6
  $region1: #{tpu_custom_call.1} parent=0
    #allocation2 [shape = 'u8[4096]{0}', space=vmem, size = 0x1000, scoped, tag = 'input window, operand 1, single buffered']
    #allocation3 [shape = 's32[1]{0}', space=sflag, size = 0x4, scoped, tag = 'scoped memory for tpu_custom_call.1']
    #allocation4 [shape = 's32[1]{0}', space=sflag, size = 0x4, scoped, tag = 'scoped memory for tpu_custom_call.1']
    #allocation5 [shape = 'u8[512]{0}', space=vmem, size = 0x400, scoped, tag = 'output window, operand 0, single buffered']
    %10 = vsyncpa [#allocation3], 0
    %11 = vsyncpa [#allocation4], 0
    // Predicated region
    $region2: #{tpu_custom_call.1} parent=1 // pred_check
      _
    $region3: #{tpu_custom_call.1} parent=1 // pred_check_branch
      %13 = sbr.rel (0) target = $region5
    $region4: #{tpu_custom_call.1} parent=1 // pred_region
      _
    $region5: #{tpu_custom_call.1} parent=1 // pred_fallthru
      _
    // Predicated region
    $region6: #{tpu_custom_call.1} parent=1 // pred_check
      _
    $region7: #{tpu_custom_call.1} parent=1 // pred_check_branch
      %15 = sbr.rel (0) target = $region9
    $region8: #{tpu_custom_call.1} parent=1 // pred_region
      %s17 = ssub.s32 128, 128
      %18 = vsyncadd [#allocation3], %s17
      %s20 = sshll.u32 [#allocation2], 4
      %s21 = int_to_ptr.vmem [resolvable:$true] %s20
      %23 = dma.hbm_to_vmem [thread:$0]  %s1, 128, %s21, [#allocation3]
    $region9: #{tpu_custom_call.1} parent=1 // pred_fallthru
      _
    // Predicated region
    $region10: #{tpu_custom_call.1} parent=1 // pred_check
      _
    $region11: #{tpu_custom_call.1} parent=1 // pred_check_branch
      %25 = sbr.rel (0) target = $region13
    $region12: #{tpu_custom_call.1} parent=1 // pred_region
      _
    $region13: #{tpu_custom_call.1} parent=1 // pred_fallthru
      _
    // Predicated region
    $region14: #{tpu_custom_call.1} parent=1 // pred_check
      _
    $region15: #{tpu_custom_call.1} parent=1 // pred_check_branch
      %27 = sbr.rel (0) target = $region17
    $region16: #{tpu_custom_call.1} parent=1 // pred_region
      %28 = dma.done [#allocation3], 128
    $region17: #{tpu_custom_call.1} parent=1 // pred_fallthru
      _
    %v29 = vld [vmem:[%s2] sm:$0xff]
    %v30 = vld [vmem:[%s2 + $0x8] sm:$0x3]
    %v31 = vmax.f32 %v29, 0.0
    %v32 = vmax.f32 %v30, 0.0
    %v33 = vand.u32 2147483647, %v29
    %v34 = vand.u32 2147483647, %v30
    %v35 = vsub.f32 0.0, %v33
    %v36 = vsub.f32 0.0, %v34
    %v37 = vmul.f32 %v35, 1.442695
    %v38 = vpow.pop %v37
    %v39 = vmul.f32 %v36, 1.442695
    %v40 = vpow.pop %v39
    %v41 = vadd.f32 %v38, 1.0
    %v42 = vadd.f32 %v40, 1.0
    %v43 = vlog2.pop %v41
    %v44 = vmul.f32 %v43, 0.6931472
    %v45 = vlog2.pop %v42
    %v46 = vmul.f32 %v45, 0.6931472
    %v47 = vadd.f32 %v31, %v44
    %v48 = vadd.f32 %v32, %v46
    %51 = vrot.lane.b32.xlu0 %v47, 96
    %v52 = vpop.permute.xlu0 %51
    %53 = vrot.lane.b32.xlu0 %v48, 96
    %v54 = vpop.permute.xlu0 %53
    %vm57 = vcmask 7168
    %58 = vst.msk [vmem:[%s4] sm:$0xff] %vm57, %v52
    %vm59 = vcmask 1024
    %60 = vst.msk [vmem:[%s4 + $0x8] sm:$0x3] %vm59, %v54
    %v61 = vld [vmem:[%s0] sm:$0xff]
    %v62 = vlaneseq
    %v63 = vand.u32 %v62, 127
    %64 = vset.pattern.permute.xlu0 0
    %65 = vperm.xlu0 %64, %v61
    %v66 = vpop.permute.xlu0 %65
    %vm67 = vcmp.eq.s32.totalorder %v63, %v66
    %v68 = vsel %vm67, 1, 0
    %v69 = vcvt.s32.f32 %v68
    %vm70 = vcmask 80896
    %v72 = vsel %vm70, %v69, 0
    %vm74 = vcmask 1041408
    %v76 = vsel %vm74, %v30, 0
    %78 = vmatprep.subr.mxu0 0.0
    %79 = vmatpush1.msra.mxu0 %v29
    %80 = vmatprep.subr.mxu0 0.0
    %81 = vmatpush1.msra.mxu0 %v76
    %82 = vmatprep.subr.mxu0 0.0
    %83 = vmatpush1.msra.mxu0 0.0
    %84 = vmatprep.subr.mxu0 0.0
    %85 = vmatpush1.msra.mxu0 0.0
    %86 = vmatprep.subr.mxu0 0.0
    %87 = vmatpush1.msra.mxu0 0.0
    %88 = vmatprep.subr.mxu0 0.0
    %89 = vmatpush1.msra.mxu0 0.0
    %90 = vmatprep.subr.mxu0 0.0
    %91 = vmatpush1.msra.mxu0 0.0
    %92 = vmatprep.subr.mxu0 0.0
    %93 = vmatpush1.msra.mxu0 0.0
    %94 = vmatprep.subr.mxu0 0.0
    %95 = vmatpush1.msra.mxu0 0.0
    %96 = vmatprep.subr.mxu0 0.0
    %97 = vmatpush1.msra.mxu0 0.0
    %98 = vmatprep.subr.mxu0 0.0
    %99 = vmatpush1.msra.mxu0 0.0
    %100 = vmatprep.subr.mxu0 0.0
    %101 = vmatpush1.msra.mxu0 0.0
    %102 = vmatprep.subr.mxu0 0.0
    %103 = vmatpush1.msra.mxu0 0.0
    %104 = vmatprep.subr.mxu0 0.0
    %105 = vmatpush1.msra.mxu0 0.0
    %106 = vmatprep.subr.mxu0 0.0
    %107 = vmatpush1.msra.mxu0 0.0
    %108 = vmatprep.subr.mxu0 0.0
    %109 = vmatpush1.msra.mxu0 0.0
    %110 = vmatprep.subr.mxu0 0.0
    %111 = vmatpush1.msra.mxu0 0.0
    %112 = vmatprep.subr.mxu0 0.0
    %113 = vmatpush1.msra.mxu0 0.0
    %114 = vmatprep.subr.mxu0 0.0
    %115 = vmatpush1.msra.mxu0 0.0
    %116 = vmatprep.subr.mxu0 0.0
    %117 = vmatpush1.msra.mxu0 0.0
    %118 = vmatprep.subr.mxu0 0.0
    %119 = vmatpush1.msra.mxu0 0.0
    %120 = vmatprep.subr.mxu0 0.0
    %121 = vmatpush1.msra.mxu0 0.0
    %122 = vmatprep.subr.mxu0 0.0
    %123 = vmatpush1.msra.mxu0 0.0
    %124 = vmatprep.subr.mxu0 0.0
    %125 = vmatpush1.msra.mxu0 0.0
    %126 = vmatprep.subr.mxu0 0.0
    %127 = vmatpush1.msra.mxu0 0.0
    %128 = vmatprep.subr.mxu0 0.0
    %129 = vmatpush1.msra.mxu0 0.0
    %130 = vmatprep.subr.mxu0 0.0
    %131 = vmatpush1.msra.mxu0 0.0
    %132 = vmatprep.subr.mxu0 0.0
    %133 = vmatpush1.msra.mxu0 0.0
    %134 = vmatprep.subr.mxu0 0.0
    %135 = vmatpush1.msra.mxu0 0.0
    %136 = vmatprep.subr.mxu0 0.0
    %137 = vmatpush1.msra.mxu0 0.0
    %138 = vmatprep.subr.mxu0 0.0
    %139 = vmatpush1.msra.mxu0 0.0
    %140 = vmatprep.subr.mxu0 0.0
    %141 = vmatpush1.msra.mxu0 0.0
    %142 = vmatprep.mubr.f32.mxu0 0.0
    %143 = vmatmul.mubr.f32.gmra.mrb[0].mxu0 %v72
    %v144 = vpop.f32.mrb[0].mxu0
    %v145 = vadd.f32 0.0, %v144
    %v146 = vpop.f32.mrb[0].mxu0
    %147 = vdwg.mxu0
    %v148 = vmax.f32 %v145, 0.0
    %v149 = vand.u32 2147483647, %v145
    %v150 = vsub.f32 0.0, %v149
    %v151 = vmul.f32 %v150, 1.442695
    %v152 = vpow.pop %v151
    %v153 = vadd.f32 %v152, 1.0
    %v154 = vlog2.pop %v153
    %v155 = vmul.f32 %v154, 0.6931472
    %v156 = vadd.f32 %v148, %v155
    %v157 = vld [vmem:[#allocation2] sm:$0xff]
    %v158 = vsub.f32 %v157, %v145
    %v159 = vmul.f32 %v158, %v158
    %vm160 = vcmask 261120
    %v161 = vsel %vm160, %v159, 0.0
    %162 = vadd.xlane.f32.xlu0 %v161
    %v163 = vpop.xlane.xlu0 %162
    %v164 = vrsqrt.pop %v163
    %v165 = vmul.f32 %v163, %v164
    %vm166 = vcmp.eq.f32.partialorder %v163, inf
    %v167 = vsel %vm166, %v163, %v165
    %vm168 = vcmp.eq.f32.partialorder %v163, 0.0
    %v169 = vand.u32 %v163, 2147483648
    %v170 = vsel %vm168, %v169, %v167
    %v171 = vsub.f32 %v170, %v156
    %v172 = vand.u32 2147483647, %v171
    %vm173 = vcmask 269568
    %v174 = vsel %vm173, %v172, 0.0
    %v175 = vrot.slane %v174, 4
    %v176 = vadd.f32 %v174, %v175
    %v177 = vrot.slane %v176, 2
    %v178 = vadd.f32 %v176, %v177
    %v179 = vrot.slane %v178, 1
    %v180 = vadd.f32 %v178, %v179
    %v181 = vrcp.pop 8.0
    %v182 = vmul.f32 %v180, %v181
    %184 = vrot.lane.b32.xlu0 %v182, 96
    %v185 = vpop.permute.xlu0 %184
    %vm187 = vcmask 0
    %188 = vst.msk [vmem:[#allocation5] sm:$0x1] %vm187, %v185
    // Predicated region
    $region18: #{tpu_custom_call.1} parent=1 // pred_check
      _
    $region19: #{tpu_custom_call.1} parent=1 // pred_check_branch
      %190 = sbr.rel (0) target = $region21
    $region20: #{tpu_custom_call.1} parent=1 // pred_region
      %s192 = ssub.s32 16, 16
      %193 = vsyncadd [#allocation4], %s192
      %s195 = sshll.u32 [#allocation5], 4
      %s196 = int_to_ptr.vmem [resolvable:$true] %s195
      %198 = dma.vmem_to_hbm [thread:$0]  %s196, 16, %s3, [#allocation4]
    $region21: #{tpu_custom_call.1} parent=1 // pred_fallthru
      _
    // Predicated region
    $region22: #{tpu_custom_call.1} parent=1 // pred_check
      _
    $region23: #{tpu_custom_call.1} parent=1 // pred_check_branch
      %200 = sbr.rel (0) target = $region25
    $region24: #{tpu_custom_call.1} parent=1 // pred_region
      _
    $region25: #{tpu_custom_call.1} parent=1 // pred_fallthru
      _
    // Predicated region
    $region26: #{tpu_custom_call.1} parent=1 // pred_check
      _
    $region27: #{tpu_custom_call.1} parent=1 // pred_check_branch
      %202 = sbr.rel (0) target = $region29
    $region28: #{tpu_custom_call.1} parent=1 // pred_region
      %203 = dma.done [#allocation4], 16
    $region29: #{tpu_custom_call.1} parent=1 // pred_fallthru
      _
    // Predicated region
    $region30: #{tpu_custom_call.1} parent=1 // pred_check
      _
    $region31: #{tpu_custom_call.1} parent=1 // pred_check_branch
      %205 = sbr.rel (0) target = $region33
    $region32: #{tpu_custom_call.1} parent=1 // pred_region
      _
    $region33: #{tpu_custom_call.1} parent=1 // pred_fallthru
      _
    %206 = vsyncpa [#allocation3], 1
    %207 = vsyncpa [#allocation4], 1

</llo_original>
